<compile_context>
chip_gen: v7x
topology: tpu7x:2x2x1
jax: 0.10.0
libtpu: 0.0.40
codegen_flags: <defaults>
</compile_context>

<pallas_src>
import functools

import jax
import jax.numpy as jnp
from jax.experimental import pallas as pl
from jax.experimental.pallas import tpu as pltpu


LANE = 128       # lane width (last dim)
SUBLANE = 8      # sublane width (second-to-last dim)
TILE_M = 256     # rows per grid step (full MXU pass on v6e/v7x; 128 already is on v5e)


def _round_up(x, m):
    return ((x + m - 1) // m) * m


# ---------------------------------------------------------------------------
# Kernel: fused 2-layer MLP for all active heads on one (tile_m, H) row block.
#   h     = relu(x @ W1c + b1c)                    f32, stays in VMEM
#   out_i = h[:, i*HP:(i+1)*HP] @ W2_i + b2_i      per head, lane-aligned slices
# ---------------------------------------------------------------------------
def _fused_mlp_kernel(x_ref, w1_ref, b1_ref, w2_ref, b2_ref, o_ref,
                      *, n_heads, hid_pad, out_pad):
    xb = x_ref[...].astype(jnp.bfloat16)             # cast in VMEM; no extra HBM trip
    h = jnp.dot(xb, w1_ref[...], preferred_element_type=jnp.float32)
    h = jnp.maximum(h + b1_ref[...], 0.0)            # f32 bias+relu (v5e has no bf16 VALU)
    hb = h.astype(jnp.bfloat16)                      # bf16 operand for 2nd MXU pass
    for i in range(n_heads):                         # static unroll (n_heads <= 2)
        hi = hb[:, i * hid_pad:(i + 1) * hid_pad]    # lane-aligned, no shuffle
        acc = jnp.dot(hi, w2_ref[i], preferred_element_type=jnp.float32)
        o_ref[:, i * out_pad:(i + 1) * out_pad] = acc + b2_ref[i]


def _fused_mlp_pallas(x2d, w1c, b1c, w2s, b2s, *, tile_m):
    Mp, H = x2d.shape
    n_heads, HP, OP = w2s.shape
    Hc = w1c.shape[1]
    Np = n_heads * OP
    assert Mp % tile_m == 0

    kernel = functools.partial(_fused_mlp_kernel,
                               n_heads=n_heads, hid_pad=HP, out_pad=OP)

    def _isz(a):
        return jnp.dtype(a.dtype).itemsize

    # Rough VMEM footprint: double-buffered x / out tiles, (double-buffered)
    # resident weight/bias slabs, f32 h intermediate, 1 MiB slack.
    est = (2 * tile_m * H * _isz(x2d)
           + 2 * tile_m * Np * 4
           + 2 * (w1c.size * _isz(w1c) + b1c.size * _isz(b1c)
                  + w2s.size * _isz(w2s) + b2s.size * _isz(b2s))
           + tile_m * Hc * 4
           + (1 << 20))
    # Raise the scoped limit only when needed; on v7x (64 MiB physical) prefer
    # shrinking TILE_M over pushing the limit past ~48 MiB.
    vmem_limit = None if est <= (12 << 20) else int(min(2 * est, 48 << 20))

    return pl.pallas_call(
        kernel,
        out_shape=jax.ShapeDtypeStruct((Mp, Np), jnp.float32),
        grid=(Mp // tile_m,),
        in_specs=[
            pl.BlockSpec((tile_m, H), lambda i: (i, 0)),         # x rows (H = full lane dim)
            pl.BlockSpec((H, Hc), lambda i: (0, 0)),             # w1c, resident
            pl.BlockSpec((1, Hc), lambda i: (0, 0)),             # b1c, resident
            pl.BlockSpec((n_heads, HP, OP), lambda i: (0, 0, 0)),  # per-head w2, resident
            pl.BlockSpec((n_heads, 1, OP), lambda i: (0, 0, 0)),   # per-head b2, resident
        ],
        out_specs=pl.BlockSpec((tile_m, Np), lambda i: (i, 0)),
        compiler_params=pltpu.CompilerParams(
            dimension_semantics=("parallel",),   # shards M across TCs on v7x
            vmem_limit_bytes=vmem_limit),
    )(x2d, w1c, b1c, w2s, b2s)


# ---------------------------------------------------------------------------
# Parameter packing: layer-1 weights of all active heads concatenated along the
# lane axis (each head's hidden padded to a 128-lane segment); layer-2 weights
# kept per head (stacked), each padded to (128, 128).  Weights bf16, biases f32.
# Zero padding guarantees padded lanes contribute exactly 0.
# ---------------------------------------------------------------------------
def _fuse_and_pad_heads(head_params, weight_dtype=jnp.bfloat16, bias_dtype=jnp.float32):
    H = head_params[0]["w1"].shape[0]
    n_heads = len(head_params)
    HP = max(_round_up(p["w1"].shape[1], LANE) for p in head_params)
    OP = max(_round_up(p["w2"].shape[1], LANE) for p in head_params)
    Hc = n_heads * HP

    w1c = jnp.zeros((H, Hc), weight_dtype)
    b1c = jnp.zeros((1, Hc), bias_dtype)
    w2s = jnp.zeros((n_heads, HP, OP), weight_dtype)
    b2s = jnp.zeros((n_heads, 1, OP), bias_dtype)

    col_slices = []
    for i, p in enumerate(head_params):
        hid = p["w1"].shape[1]
        nout = p["w2"].shape[1]
        w1c = w1c.at[:, i * HP:i * HP + hid].set(p["w1"].astype(weight_dtype))
        b1c = b1c.at[0, i * HP:i * HP + hid].set(p["b1"].astype(bias_dtype))
        w2s = w2s.at[i, :hid, :nout].set(p["w2"].astype(weight_dtype))
        b2s = b2s.at[i, 0, :nout].set(p["b2"].astype(bias_dtype))
        col_slices.append((i * OP, i * OP + nout))   # lane-aligned segment starts
    return w1c, b1c, w2s, b2s, tuple(col_slices)


# ---------------------------------------------------------------------------
# Jitted forward: one fused pallas_call, lane-aligned per-head slices.
# ---------------------------------------------------------------------------
def _forward_impl(x, w1c, b1c, w2s, b2s, *, names, col_slices):
    B, S, H = x.shape
    M = B * S
    tile_m = TILE_M if M >= TILE_M else _round_up(max(M, SUBLANE), SUBLANE)
    Mp = _round_up(M, tile_m)
    x2d = x.reshape(M, H)
    if Mp != M:
        x2d = jnp.pad(x2d, ((0, Mp - M), (0, 0)))    # only M padded (no K inflation)
    y = _fused_mlp_pallas(x2d, w1c, b1c, w2s, b2s, tile_m=tile_m)
    out = {}
    for name, (c0, c1) in zip(names, col_slices):
        out[name] = y[:M, c0:c1].reshape(B, S, c1 - c0)
    return out


# ---------------------------------------------------------------------------
# Synthetic sub-network parameters (two-layer MLP heads).
# ---------------------------------------------------------------------------
def _init_mlp_params(key, in_dim, hid_dim, out_dim, dtype=jnp.float32):
    k1, k2 = jax.random.split(key)
    scale1 = 1.0 / jnp.sqrt(jnp.float32(in_dim))
    scale2 = 1.0 / jnp.sqrt(jnp.float32(hid_dim))
    return {
        "w1": (jax.random.normal(k1, (in_dim, hid_dim)) * scale1).astype(dtype),
        "b1": jnp.zeros((hid_dim,), dtype),
        "w2": (jax.random.normal(k2, (hid_dim, out_dim)) * scale2).astype(dtype),
        "b2": jnp.zeros((out_dim,), dtype),
    }


class Args:
    def __init__(self, setting):
        self.setting = setting


class DialogueNetPallas:
    """Mirror of DialogueNet.forward dispatch semantics (dst / c2t / e2e)."""

    def __init__(self, dst_params, nlg_params, dp_params, args):
        self.args = args
        self.dp_params = dp_params
        # TODO(synk): dp_net is never called in the reference forward(); kept only as state.

        heads = []
        if args.setting in ("dst", "e2e"):
            heads.append(("dst_logits", dst_params))
        if args.setting in ("c2t", "e2e"):
            heads.append(("nlg_logits", nlg_params))

        self._names = tuple(name for name, _ in heads)
        if heads:
            (self._w1c, self._b1c, self._w2s, self._b2s,
             col_slices) = _fuse_and_pad_heads([p for _, p in heads])
            self._forward = jax.jit(functools.partial(
                _forward_impl, names=self._names, col_slices=col_slices))
        else:
            self._forward = None

    def __call__(self, batch):
        if self._forward is None:
            return {}
        x = batch["features"]                      # (B, S, H)
        return self._forward(x, self._w1c, self._b1c, self._w2s, self._b2s)


# ---------------------------------------------------------------------------
# References for correctness checks.
# ---------------------------------------------------------------------------
def _mlp_ref_bf16(params, x2d):
    """Plain-JAX reference that mirrors the kernel's bf16 operand casts."""
    xb = x2d.astype(jnp.bfloat16)
    h = jnp.dot(xb, params["w1"].astype(jnp.bfloat16),
                preferred_element_type=jnp.float32)
    h = jnp.maximum(h + params["b1"].astype(jnp.float32), 0.0)
    hb = h.astype(jnp.bfloat16)
    return (jnp.dot(hb, params["w2"].astype(jnp.bfloat16),
                    preferred_element_type=jnp.float32)
            + params["b2"].astype(jnp.float32))


def _mlp_ref_f32(params, x2d):
    h = jnp.maximum(x2d @ params["w1"] + params["b1"], 0.0)
    return h @ params["w2"] + params["b2"]


if __name__ == "__main__":
    B, S, H = 2, 8, 32          # batch, seq, hidden
    N_SLOTS, N_VOCAB = 16, 64   # dst / nlg output dims

    key = jax.random.PRNGKey(0)
    k_x, k_x2, k_dst, k_nlg, k_dp = jax.random.split(key, 5)

    dst_params = _init_mlp_params(k_dst, H, H, N_SLOTS)
    nlg_params = _init_mlp_params(k_nlg, H, H, N_VOCAB)
    dp_params = _init_mlp_params(k_dp, H, H, H)   # unused in forward

    x = jax.random.normal(k_x, (B, S, H), dtype=jnp.float32)
    x2d = x.reshape(B * S, H)

    # --- e2e setting: both heads fused into one pallas_call -----------------
    net = DialogueNetPallas(dst_params, nlg_params, dp_params, Args("e2e"))
    out = net({"features": x})
    jax.block_until_ready(out)

    ref_dst = _mlp_ref_bf16(dst_params, x2d).reshape(B, S, N_SLOTS)
    ref_nlg = _mlp_ref_bf16(nlg_params, x2d).reshape(B, S, N_VOCAB)
    assert out["dst_logits"].shape == (B, S, N_SLOTS)
    assert out["nlg_logits"].shape == (B, S, N_VOCAB)
    assert jnp.allclose(out["dst_logits"], ref_dst, atol=2e-3, rtol=2e-3)
    assert jnp.allclose(out["nlg_logits"], ref_nlg, atol=2e-3, rtol=2e-3)
    # semantic sanity vs pure-f32 reference (bf16 operand cast => loose tolerance)
    assert jnp.allclose(out["dst_logits"],
                        _mlp_ref_f32(dst_params, x2d).reshape(B, S, N_SLOTS),
                        atol=0.25, rtol=0.1)
    assert jnp.allclose(out["nlg_logits"],
                        _mlp_ref_f32(nlg_params, x2d).reshape(B, S, N_VOCAB),
                        atol=0.25, rtol=0.1)

    # --- dst-only setting (single head path) --------------------------------
    net_dst = DialogueNetPallas(dst_params, nlg_params, dp_params, Args("dst"))
    out_dst = net_dst({"features": x})
    jax.block_until_ready(out_dst)
    assert set(out_dst.keys()) == {"dst_logits"}
    assert jnp.allclose(out_dst["dst_logits"], ref_dst, atol=2e-3, rtol=2e-3)

    # --- larger M to exercise the multi-step "parallel" grid + row padding ---
    B2, S2 = 4, 100                               # M = 400 -> Mp = 512, 2 grid steps
    x_big = jax.random.normal(k_x2, (B2, S2, H), dtype=jnp.float32)
    out_big = net({"features": x_big})
    jax.block_until_ready(out_big)
    xb2d = x_big.reshape(B2 * S2, H)
    ref_dst_big = _mlp_ref_bf16(dst_params, xb2d).reshape(B2, S2, N_SLOTS)
    ref_nlg_big = _mlp_ref_bf16(nlg_params, xb2d).reshape(B2, S2, N_VOCAB)
    assert jnp.allclose(out_big["dst_logits"], ref_dst_big, atol=2e-3, rtol=2e-3)
    assert jnp.allclose(out_big["nlg_logits"], ref_nlg_big, atol=2e-3, rtol=2e-3)

    print("KERNEL_OK")
</pallas_src>

<mosaic_0001>
module attributes {stable_mosaic.version = 11 : i64} {
  func.func @_fused_mlp_kernel(%arg0: i32, %arg1: memref<16x32xf32, #tpu.memory_space<vmem>>, %arg2: memref<32x256xbf16, #tpu.memory_space<vmem>>, %arg3: memref<1x256xf32, #tpu.memory_space<vmem>>, %arg4: memref<2x128x128xbf16, #tpu.memory_space<vmem>>, %arg5: memref<2x1x128xf32, #tpu.memory_space<vmem>>, %arg6: memref<16x256xf32, #tpu.memory_space<vmem>>) attributes {dimension_semantics = [#tpu.dimension_semantics<parallel>], iteration_bounds = array<i64: 1>, scalar_prefetch = 0 : i64, scratch_operands = 0 : i64, tpu.core_type = #tpu.core_type<tc>, window_params = [{transform_indices = @transform_0, window_bounds = array<i64: 16, 32>}, {pipeline_mode = #tpu.pipeline_mode<synchronous>, transform_indices = @transform_1, window_bounds = array<i64: 32, 256>}, {pipeline_mode = #tpu.pipeline_mode<synchronous>, transform_indices = @transform_2, window_bounds = array<i64: 1, 256>}, {pipeline_mode = #tpu.pipeline_mode<synchronous>, transform_indices = @transform_3, window_bounds = array<i64: 2, 128, 128>}, {pipeline_mode = #tpu.pipeline_mode<synchronous>, transform_indices = @transform_4, window_bounds = array<i64: 2, 1, 128>}, {transform_indices = @transform_5, window_bounds = array<i64: 16, 256>}]} {
    %c0 = arith.constant 0 : index
    %c0_0 = arith.constant 0 : index
    %0 = vector.load %arg1[%c0, %c0_0] : memref<16x32xf32, #tpu.memory_space<vmem>>, vector<16x32xf32>
    %1 = arith.truncf %0 : vector<16x32xf32> to vector<16x32xbf16>
    %c0_1 = arith.constant 0 : index
    %c0_2 = arith.constant 0 : index
    %2 = vector.load %arg2[%c0_1, %c0_2] : memref<32x256xbf16, #tpu.memory_space<vmem>>, vector<32x256xbf16>
    %cst = arith.constant dense<0.000000e+00> : vector<16x256xf32>
    %3 = tpu.matmul %1, %2, %cst {dimension_numbers = #tpu.dot_dimension_numbers<[1], [0], [0], [1], [0, 0, 1, 1], [], []>} : vector<16x32xbf16>, vector<32x256xbf16>, vector<16x256xf32> -> vector<16x256xf32>
    %c0_3 = arith.constant 0 : index
    %c0_4 = arith.constant 0 : index
    %4 = vector.load %arg3[%c0_3, %c0_4] : memref<1x256xf32, #tpu.memory_space<vmem>>, vector<1x256xf32>
    %5 = vector.broadcast %4 : vector<1x256xf32> to vector<16x256xf32>
    %6 = arith.addf %3, %5 : vector<16x256xf32>
    %cst_5 = arith.constant 0.000000e+00 : f32
    %7 = vector.broadcast %cst_5 : f32 to vector<16x256xf32>
    %8 = arith.maximumf %6, %7 : vector<16x256xf32>
    %9 = arith.truncf %8 : vector<16x256xf32> to vector<16x256xbf16>
    %10 = vector.extract_strided_slice %9 {offsets = [0, 0], sizes = [16, 128], strides = [1, 1]} : vector<16x256xbf16> to vector<16x128xbf16>
    %c0_6 = arith.constant 0 : index
    %c0_7 = arith.constant 0 : index
    %c0_8 = arith.constant 0 : index
    %11 = vector.load %arg4[%c0_6, %c0_7, %c0_8] : memref<2x128x128xbf16, #tpu.memory_space<vmem>>, vector<1x128x128xbf16>
    %12 = vector.shape_cast %11 : vector<1x128x128xbf16> to vector<128x128xbf16>
    %cst_9 = arith.constant dense<0.000000e+00> : vector<16x128xf32>
    %13 = tpu.matmul %10, %12, %cst_9 {dimension_numbers = #tpu.dot_dimension_numbers<[1], [0], [0], [1], [0, 0, 1, 1], [], []>} : vector<16x128xbf16>, vector<128x128xbf16>, vector<16x128xf32> -> vector<16x128xf32>
    %c0_10 = arith.constant 0 : index
    %c0_11 = arith.constant 0 : index
    %c0_12 = arith.constant 0 : index
    %14 = vector.load %arg5[%c0_10, %c0_11, %c0_12] : memref<2x1x128xf32, #tpu.memory_space<vmem>>, vector<1x1x128xf32>
    %15 = vector.shape_cast %14 : vector<1x1x128xf32> to vector<1x128xf32>
    %16 = vector.broadcast %15 : vector<1x128xf32> to vector<16x128xf32>
    %17 = arith.addf %13, %16 : vector<16x128xf32>
    %c0_13 = arith.constant 0 : index
    %c0_14 = arith.constant 0 : index
    %18 = vector.load %arg6[%c0_13, %c0_14] : memref<16x256xf32, #tpu.memory_space<vmem>>, vector<16x128xf32>
    tpu.vector_store %arg6[%c0_13, %c0_14], %17 {strides = array<i32>} : memref<16x256xf32, #tpu.memory_space<vmem>>, vector<16x128xf32>,
    %19 = vector.extract_strided_slice %9 {offsets = [0, 128], sizes = [16, 128], strides = [1, 1]} : vector<16x256xbf16> to vector<16x128xbf16>
    %c1 = arith.constant 1 : index
    %c0_15 = arith.constant 0 : index
    %c0_16 = arith.constant 0 : index
    %20 = vector.load %arg4[%c1, %c0_15, %c0_16] : memref<2x128x128xbf16, #tpu.memory_space<vmem>>, vector<1x128x128xbf16>
    %21 = vector.shape_cast %20 : vector<1x128x128xbf16> to vector<128x128xbf16>
    %cst_17 = arith.constant dense<0.000000e+00> : vector<16x128xf32>
    %22 = tpu.matmul %19, %21, %cst_17 {dimension_numbers = #tpu.dot_dimension_numbers<[1], [0], [0], [1], [0, 0, 1, 1], [], []>} : vector<16x128xbf16>, vector<128x128xbf16>, vector<16x128xf32> -> vector<16x128xf32>
    %c1_18 = arith.constant 1 : index
    %c0_19 = arith.constant 0 : index
    %c0_20 = arith.constant 0 : index
    %23 = vector.load %arg5[%c1_18, %c0_19, %c0_20] : memref<2x1x128xf32, #tpu.memory_space<vmem>>, vector<1x1x128xf32>
    %24 = vector.shape_cast %23 : vector<1x1x128xf32> to vector<1x128xf32>
    %25 = vector.broadcast %24 : vector<1x128xf32> to vector<16x128xf32>
    %26 = arith.addf %22, %25 : vector<16x128xf32>
    %c0_21 = arith.constant 0 : index
    %c128 = arith.constant 128 : index
    %27 = vector.load %arg6[%c0_21, %c128] : memref<16x256xf32, #tpu.memory_space<vmem>>, vector<16x128xf32>
    tpu.vector_store %arg6[%c0_21, %c128], %26 {strides = array<i32>} : memref<16x256xf32, #tpu.memory_space<vmem>>, vector<16x128xf32>,
    return
  }
  func.func @transform_0(%arg0: i32) -> (i32, i32) {
    %c0_i32 = arith.constant 0 : i32
    %c0_i32_0 = arith.constant 0 : i32
    return %arg0, %c0_i32 : i32, i32
  }
  func.func @transform_1(%arg0: i32) -> (i32, i32) {
    %c0_i32 = arith.constant 0 : i32
    %c0_i32_0 = arith.constant 0 : i32
    %c0_i32_1 = arith.constant 0 : i32
    return %c0_i32, %c0_i32_0 : i32, i32
  }
  func.func @transform_2(%arg0: i32) -> (i32, i32) {
    %c0_i32 = arith.constant 0 : i32
    %c0_i32_0 = arith.constant 0 : i32
    %c0_i32_1 = arith.constant 0 : i32
    return %c0_i32, %c0_i32_0 : i32, i32
  }
  func.func @transform_3(%arg0: i32) -> (i32, i32, i32) {
    %c0_i32 = arith.constant 0 : i32
    %c0_i32_0 = arith.constant 0 : i32
    %c0_i32_1 = arith.constant 0 : i32
    %c0_i32_2 = arith.constant 0 : i32
    return %c0_i32, %c0_i32_0, %c0_i32_1 : i32, i32, i32
  }
  func.func @transform_4(%arg0: i32) -> (i32, i32, i32) {
    %c0_i32 = arith.constant 0 : i32
    %c0_i32_0 = arith.constant 0 : i32
    %c0_i32_1 = arith.constant 0 : i32
    %c0_i32_2 = arith.constant 0 : i32
    return %c0_i32, %c0_i32_0, %c0_i32_1 : i32, i32, i32
  }
  func.func @transform_5(%arg0: i32) -> (i32, i32) {
    %c0_i32 = arith.constant 0 : i32
    %c0_i32_0 = arith.constant 0 : i32
    return %arg0, %c0_i32 : i32, i32
  }
}

</mosaic_0001>

<llo_original>
// kernel: _forward_impl.1
$region0: #{_forward_impl.1}
  #allocation0 [shape = 'u32[]', space=smem, size = 0x4, offset = 0x4, fixed_abs, tag = 'smem constant byte address 0x4 - core index']
  #allocation1 [shape = 'u32[144,128]{1,0:T(1,128)}', space=vmem, size = 0x12000, scoped, tag = 'internal scratch']
  %s0 = inlined_call_operand.hbm [shape: f32[16,32], index: 0, kind: input, shape index: {}]
  %s1 = inlined_call_operand.hbm [shape: bf16[32,256], index: 1, kind: input, shape index: {}]
  %s2 = inlined_call_operand.vmem [shape: f32[1,256], index: 2, kind: input, shape index: {}]
  %s3 = inlined_call_operand.hbm [shape: bf16[2,128,128], index: 3, kind: input, shape index: {}]
  %s4 = inlined_call_operand.vmem [shape: f32[2,1,128], index: 4, kind: input, shape index: {}]
  %s5 = inlined_call_operand.vmem [shape: f32[16,256], index: 5, kind: output, shape index: {}]
  %s6 = sld [smem:[#allocation0]]
  $region42: #{_forward_impl.1} parent=0
    _
  %s8 = ssub.s32 1, %s6
  %s9 = scalar_select 0, %s8, %s6
  $region1: #{_forward_impl.1} parent=0
    #allocation2 [shape = 'u8[8192]{0}', space=vmem, size = 0x2000, scoped, tag = 'input window, operand 0, single buffered']
    #allocation3 [shape = 's32[1]{0}', space=sflag, size = 0x4, scoped, tag = 'scoped memory for _forward_impl.1']
    #allocation4 [shape = 'u8[16384]{0}', space=vmem, size = 0x4000, scoped, tag = 'input window, operand 1, single buffered']
    #allocation5 [shape = 's32[1]{0}', space=sflag, size = 0x4, scoped, tag = 'scoped memory for _forward_impl.1']
    #allocation6 [shape = 'u8[65536]{0}', space=vmem, size = 0x10000, scoped, tag = 'input window, operand 3, single buffered']
    %10 = vsyncpa [#allocation3], 0
    %11 = vsyncpa [#allocation5], 0
    // Predicated region
    $region2: #{_forward_impl.1} parent=1 // pred_check
      _
    $region3: #{_forward_impl.1} parent=1 // pred_check_branch
      %13 = sbr.rel (0) target = $region5
    $region4: #{_forward_impl.1} parent=1 // pred_region
      %s15 = ssub.s32 256, 256
      %16 = vsyncadd [#allocation3], %s15
      %s17 = sshll.u32 [#allocation2], 4
      %s18 = int_to_ptr.vmem [resolvable:$true] %s17
      %23 = dma.hbm_to_vmem [thread:$0]  %s0, 256, %s18, [#allocation3], 128, 128, 8
    $region5: #{_forward_impl.1} parent=1 // pred_fallthru
      _
    // Predicated region
    $region6: #{_forward_impl.1} parent=1 // pred_check
      _
    $region7: #{_forward_impl.1} parent=1 // pred_check_branch
      %25 = sbr.rel (0) target = $region9
    $region8: #{_forward_impl.1} parent=1 // pred_region
      %s27 = ssub.s32 512, 512
      %28 = vsyncadd [#allocation5], %s27
      %s29 = sshll.u32 [#allocation4], 4
      %s30 = int_to_ptr.vmem [resolvable:$true] %s29
      %35 = dma.hbm_to_vmem [thread:$0]  %s1, 512, %s30, [#allocation5], 128, 128, 8
    $region9: #{_forward_impl.1} parent=1 // pred_fallthru
      _
    // Predicated region
    $region10: #{_forward_impl.1} parent=1 // pred_check
      _
    $region11: #{_forward_impl.1} parent=1 // pred_check_branch
      %37 = sbr.rel (0) target = $region13
    $region12: #{_forward_impl.1} parent=1 // pred_region
      _
    $region13: #{_forward_impl.1} parent=1 // pred_fallthru
      _
    // Predicated region
    $region14: #{_forward_impl.1} parent=1 // pred_check
      _
    $region15: #{_forward_impl.1} parent=1 // pred_check_branch
      %39 = sbr.rel (0) target = $region17
    $region16: #{_forward_impl.1} parent=1 // pred_region
      %s41 = ssub.s32 2048, 2048
      %42 = vsyncadd [#allocation5], %s41
      %s43 = sshll.u32 [#allocation6], 4
      %s44 = int_to_ptr.vmem [resolvable:$true] %s43
      %49 = dma.hbm_to_vmem [thread:$0]  %s3, 2048, %s44, [#allocation5], 64, 64, 4
    $region17: #{_forward_impl.1} parent=1 // pred_fallthru
      _
    // Predicated region
    $region18: #{_forward_impl.1} parent=1 // pred_check
      _
    $region19: #{_forward_impl.1} parent=1 // pred_check_branch
      %51 = sbr.rel (0) target = $region21
    $region20: #{_forward_impl.1} parent=1 // pred_region
      _
    $region21: #{_forward_impl.1} parent=1 // pred_fallthru
      _
    // Predicated region
    $region22: #{_forward_impl.1} parent=1 // pred_check
      _
    $region23: #{_forward_impl.1} parent=1 // pred_check_branch
      %53 = sbr.rel (0) target = $region25
    $region24: #{_forward_impl.1} parent=1 // pred_region
      %54 = dma.done [#allocation3], 256
    $region25: #{_forward_impl.1} parent=1 // pred_fallthru
      _
    // Predicated region
    $region26: #{_forward_impl.1} parent=1 // pred_check
      _
    $region27: #{_forward_impl.1} parent=1 // pred_check_branch
      %56 = sbr.rel (0) target = $region29
    $region28: #{_forward_impl.1} parent=1 // pred_region
      %57 = dma.done [#allocation5], 512
    $region29: #{_forward_impl.1} parent=1 // pred_fallthru
      _
    // Predicated region
    $region30: #{_forward_impl.1} parent=1 // pred_check
      _
    $region31: #{_forward_impl.1} parent=1 // pred_check_branch
      %59 = sbr.rel (0) target = $region33
    $region32: #{_forward_impl.1} parent=1 // pred_region
      %60 = dma.done [#allocation5], 2048
    $region33: #{_forward_impl.1} parent=1 // pred_fallthru
      _
    %v62 = vld [vmem:[#allocation2] sm:$0xff]
    %v63 = vld [vmem:[#allocation2 + $0x8] sm:$0xff]
    %v64 = vpack.c.bf16 %v63, %v62
    %v65 = vld [vmem:[#allocation4] sm:$0xff]
    %v66 = vld [vmem:[#allocation4 + $0x8] sm:$0xff]
    %v67 = vld [vmem:[#allocation4 + $0x10] sm:$0xff]
    %v68 = vld [vmem:[#allocation4 + $0x18] sm:$0xff]
    %v69 = vld [vmem:[%s2] sm:$0x3]
    %v71 = vlaneseq
    %v72 = vshrl.u32 %v71, 7
    %v73 = vsub.s32 0, %v72
    %v74 = vrot.slane %v69, %v73
    %v75 = vlaneseq
    %v76 = vshrl.u32 %v75, 7
    %v77 = vsub.s32 1, %v76
    %v78 = vrot.slane %v69, %v77
    %v85 = vunpack.c.l.b16 %v65
    %v86 = vunpack.c.h.b16 %v65
    %v87 = vunpack.c.l.b16 %v66
    %v88 = vunpack.c.h.b16 %v66
    %v89 = vunpack.c.l.b16 %v67
    %v90 = vunpack.c.h.b16 %v67
    %v91 = vunpack.c.l.b16 %v68
    %v92 = vunpack.c.h.b16 %v68
    %v93 = vpack.c.b16 %v87, %v85
    %v94 = vpack.c.b16 %v88, %v86
    %v95 = vpack.c.b16 %v91, %v89
    %v96 = vpack.c.b16 %v92, %v90
    %vm101 = vcmask 261120
    %v103 = vsel %vm101, %v64, 0
    %105 = vmatprep.subr.bf16.mxu0 %v94
    %106 = vmatpush1.bf16.msra.mxu0 %v93
    %107 = vmatprep.subr.bf16.mxu0 %v96
    %108 = vmatpush1.bf16.msra.mxu0 %v95
    %109 = vmatprep.subr.bf16.mxu0 0
    %110 = vmatpush1.bf16.msra.mxu0 0
    %111 = vmatprep.subr.bf16.mxu0 0
    %112 = vmatpush1.bf16.msra.mxu0 0
    %113 = vmatprep.subr.bf16.mxu0 0
    %114 = vmatpush1.bf16.msra.mxu0 0
    %115 = vmatprep.subr.bf16.mxu0 0
    %116 = vmatpush1.bf16.msra.mxu0 0
    %117 = vmatprep.subr.bf16.mxu0 0
    %118 = vmatpush1.bf16.msra.mxu0 0
    %119 = vmatprep.subr.bf16.mxu0 0
    %120 = vmatpush1.bf16.msra.mxu0 0
    %121 = vmatprep.subr.bf16.mxu0 0
    %122 = vmatpush1.bf16.msra.mxu0 0
    %123 = vmatprep.subr.bf16.mxu0 0
    %124 = vmatpush1.bf16.msra.mxu0 0
    %125 = vmatprep.subr.bf16.mxu0 0
    %126 = vmatpush1.bf16.msra.mxu0 0
    %127 = vmatprep.subr.bf16.mxu0 0
    %128 = vmatpush1.bf16.msra.mxu0 0
    %129 = vmatprep.subr.bf16.mxu0 0
    %130 = vmatpush1.bf16.msra.mxu0 0
    %131 = vmatprep.subr.bf16.mxu0 0
    %132 = vmatpush1.bf16.msra.mxu0 0
    %133 = vmatprep.subr.bf16.mxu0 0
    %134 = vmatpush1.bf16.msra.mxu0 0
    %135 = vmatprep.subr.bf16.mxu0 0
    %136 = vmatpush1.bf16.msra.mxu0 0
    %137 = vmatprep.mubr.bf16.mxu0 0
    %138 = vmatmul.mubr.bf16.gmra.mrb[0].mxu0 %v103
    %v139 = vpop.f32.mrb[0].mxu0
    %v140 = vadd.f32 %v74, %v139
    %v141 = vpop.f32.mrb[0].mxu0
    %v142 = vadd.f32 %v78, %v141
    %v143 = vpop.f32.mrb[0].mxu0
    %v144 = vadd.f32 %v74, %v143
    %v145 = vpop.f32.mrb[0].mxu0
    %v146 = vadd.f32 %v78, %v145
    %147 = vdwg.mxu0
    %v148 = vmax.f32 %v140, 0.0
    %v149 = vmax.f32 %v142, 0.0
    %v150 = vmax.f32 %v144, 0.0
    %v151 = vmax.f32 %v146, 0.0
    %v152 = vpack.c.bf16 %v150, %v148
    %v153 = vpack.c.bf16 %v151, %v149
    %v154 = vld [vmem:[#allocation6] sm:$0xf]
    %v155 = vld [vmem:[#allocation6 + $0x4] sm:$0xf]
    %v156 = vld [vmem:[#allocation6 + $0x8] sm:$0xf]
    %v157 = vld [vmem:[#allocation6 + $0xc] sm:$0xf]
    %v158 = vld [vmem:[#allocation6 + $0x10] sm:$0xf]
    %v159 = vld [vmem:[#allocation6 + $0x14] sm:$0xf]
    %v160 = vld [vmem:[#allocation6 + $0x18] sm:$0xf]
    %v161 = vld [vmem:[#allocation6 + $0x1c] sm:$0xf]
    %v162 = vld [vmem:[#allocation6 + $0x20] sm:$0xf]
    %v163 = vld [vmem:[#allocation6 + $0x24] sm:$0xf]
    %v164 = vld [vmem:[#allocation6 + $0x28] sm:$0xf]
    %v165 = vld [vmem:[#allocation6 + $0x2c] sm:$0xf]
    %v166 = vld [vmem:[#allocation6 + $0x30] sm:$0xf]
    %v167 = vld [vmem:[#allocation6 + $0x34] sm:$0xf]
    %v168 = vld [vmem:[#allocation6 + $0x38] sm:$0xf]
    %v169 = vld [vmem:[#allocation6 + $0x3c] sm:$0xf]
    %v170 = vld [vmem:[%s4] sm:$0x1]
    %v172 = vlaneseq
    %v173 = vshrl.u32 %v172, 7
    %v174 = vsub.s32 0, %v173
    %v175 = vrot.slane %v170, %v174
    %v193 = vunpack.c.l.b16 %v154
    %v194 = vunpack.c.l.b16 %v155
    %v195 = vunpack.c.l.b16 %v156
    %v196 = vunpack.c.l.b16 %v157
    %v197 = vunpack.c.l.b16 %v158
    %v198 = vunpack.c.l.b16 %v159
    %v199 = vunpack.c.l.b16 %v160
    %v200 = vunpack.c.l.b16 %v161
    %v201 = vunpack.c.l.b16 %v162
    %v202 = vunpack.c.l.b16 %v163
    %v203 = vunpack.c.l.b16 %v164
    %v204 = vunpack.c.l.b16 %v165
    %v205 = vunpack.c.l.b16 %v166
    %v206 = vunpack.c.l.b16 %v167
    %v207 = vunpack.c.l.b16 %v168
    %v208 = vunpack.c.l.b16 %v169
    %v209 = vpack.c.b16 %v194, %v193
    %v210 = vpack.c.b16 %v196, %v195
    %v211 = vpack.c.b16 %v198, %v197
    %v212 = vpack.c.b16 %v200, %v199
    %v213 = vpack.c.b16 %v202, %v201
    %v214 = vpack.c.b16 %v204, %v203
    %v215 = vpack.c.b16 %v206, %v205
    %v216 = vpack.c.b16 %v208, %v207
    %225 = vmatprep.subr.bf16.mxu0 0
    %226 = vmatpush1.bf16.msra.mxu0 %v209
    %227 = vmatprep.subr.bf16.mxu0 0
    %228 = vmatpush1.bf16.msra.mxu0 %v210
    %229 = vmatprep.subr.bf16.mxu0 0
    %230 = vmatpush1.bf16.msra.mxu0 %v211
    %231 = vmatprep.subr.bf16.mxu0 0
    %232 = vmatpush1.bf16.msra.mxu0 %v212
    %233 = vmatprep.subr.bf16.mxu0 0
    %234 = vmatpush1.bf16.msra.mxu0 %v213
    %235 = vmatprep.subr.bf16.mxu0 0
    %236 = vmatpush1.bf16.msra.mxu0 %v214
    %237 = vmatprep.subr.bf16.mxu0 0
    %238 = vmatpush1.bf16.msra.mxu0 %v215
    %239 = vmatprep.subr.bf16.mxu0 0
    %240 = vmatpush1.bf16.msra.mxu0 %v216
    %241 = vmatprep.subr.bf16.mxu0 0
    %242 = vmatpush1.bf16.msra.mxu0 0
    %243 = vmatprep.subr.bf16.mxu0 0
    %244 = vmatpush1.bf16.msra.mxu0 0
    %245 = vmatprep.subr.bf16.mxu0 0
    %246 = vmatpush1.bf16.msra.mxu0 0
    %247 = vmatprep.subr.bf16.mxu0 0
    %248 = vmatpush1.bf16.msra.mxu0 0
    %249 = vmatprep.subr.bf16.mxu0 0
    %250 = vmatpush1.bf16.msra.mxu0 0
    %251 = vmatprep.subr.bf16.mxu0 0
    %252 = vmatpush1.bf16.msra.mxu0 0
    %253 = vmatprep.subr.bf16.mxu0 0
    %254 = vmatpush1.bf16.msra.mxu0 0
    %255 = vmatprep.subr.bf16.mxu0 0
    %256 = vmatpush1.bf16.msra.mxu0 0
    %257 = vmatprep.mubr.bf16.mxu0 0
    %258 = vmatmul.mubr.bf16.gmra.mrb[0].mxu0 %v152
    %v259 = vpop.f32.mrb[0].mxu0
    %v260 = vadd.f32 %v175, %v259
    %v261 = vpop.f32.mrb[0].mxu0
    %v262 = vpop.f32.mrb[0].mxu0
    %v263 = vadd.f32 %v175, %v262
    %v264 = vpop.f32.mrb[0].mxu0
    %265 = vdwg.mxu0
    %266 = vst [vmem:[%s5] sm:$0xff] %v260
    %267 = vst [vmem:[%s5 + $0x10] sm:$0xff] %v263
    %s268 = scalar_lea.vmem [#allocation6], 64
    %v269 = vld [vmem:[%s268] sm:$0xf]
    %v270 = vld [vmem:[%s268 + $0x4] sm:$0xf]
    %v271 = vld [vmem:[%s268 + $0x8] sm:$0xf]
    %v272 = vld [vmem:[%s268 + $0xc] sm:$0xf]
    %v273 = vld [vmem:[%s268 + $0x10] sm:$0xf]
    %v274 = vld [vmem:[%s268 + $0x14] sm:$0xf]
    %v275 = vld [vmem:[%s268 + $0x18] sm:$0xf]
    %v276 = vld [vmem:[%s268 + $0x1c] sm:$0xf]
    %v277 = vld [vmem:[%s268 + $0x20] sm:$0xf]
    %v278 = vld [vmem:[%s268 + $0x24] sm:$0xf]
    %v279 = vld [vmem:[%s268 + $0x28] sm:$0xf]
    %v280 = vld [vmem:[%s268 + $0x2c] sm:$0xf]
    %v281 = vld [vmem:[%s268 + $0x30] sm:$0xf]
    %v282 = vld [vmem:[%s268 + $0x34] sm:$0xf]
    %v283 = vld [vmem:[%s268 + $0x38] sm:$0xf]
    %v284 = vld [vmem:[%s268 + $0x3c] sm:$0xf]
    %s285 = scalar_lea.vmem %s4, 1
    %v286 = vld [vmem:[%s285] sm:$0x1]
    %v288 = vlaneseq
    %v289 = vshrl.u32 %v288, 7
    %v290 = vsub.s32 0, %v289
    %v291 = vrot.slane %v286, %v290
    %v309 = vunpack.c.l.b16 %v269
    %v310 = vunpack.c.l.b16 %v270
    %v311 = vunpack.c.l.b16 %v271
    %v312 = vunpack.c.l.b16 %v272
    %v313 = vunpack.c.l.b16 %v273
    %v314 = vunpack.c.l.b16 %v274
    %v315 = vunpack.c.l.b16 %v275
    %v316 = vunpack.c.l.b16 %v276
    %v317 = vunpack.c.l.b16 %v277
    %v318 = vunpack.c.l.b16 %v278
    %v319 = vunpack.c.l.b16 %v279
    %v320 = vunpack.c.l.b16 %v280
    %v321 = vunpack.c.l.b16 %v281
    %v322 = vunpack.c.l.b16 %v282
    %v323 = vunpack.c.l.b16 %v283
    %v324 = vunpack.c.l.b16 %v284
    %v325 = vpack.c.b16 %v310, %v309
    %v326 = vpack.c.b16 %v312, %v311
    %v327 = vpack.c.b16 %v314, %v313
    %v328 = vpack.c.b16 %v316, %v315
    %v329 = vpack.c.b16 %v318, %v317
    %v330 = vpack.c.b16 %v320, %v319
    %v331 = vpack.c.b16 %v322, %v321
    %v332 = vpack.c.b16 %v324, %v323
    %341 = vmatprep.subr.bf16.mxu0 0
    %342 = vmatpush1.bf16.msra.mxu0 %v325
    %343 = vmatprep.subr.bf16.mxu0 0
    %344 = vmatpush1.bf16.msra.mxu0 %v326
    %345 = vmatprep.subr.bf16.mxu0 0
    %346 = vmatpush1.bf16.msra.mxu0 %v327
    %347 = vmatprep.subr.bf16.mxu0 0
    %348 = vmatpush1.bf16.msra.mxu0 %v328
    %349 = vmatprep.subr.bf16.mxu0 0
    %350 = vmatpush1.bf16.msra.mxu0 %v329
    %351 = vmatprep.subr.bf16.mxu0 0
    %352 = vmatpush1.bf16.msra.mxu0 %v330
    %353 = vmatprep.subr.bf16.mxu0 0
    %354 = vmatpush1.bf16.msra.mxu0 %v331
    %355 = vmatprep.subr.bf16.mxu0 0
    %356 = vmatpush1.bf16.msra.mxu0 %v332
    %357 = vmatprep.subr.bf16.mxu0 0
    %358 = vmatpush1.bf16.msra.mxu0 0
    %359 = vmatprep.subr.bf16.mxu0 0
    %360 = vmatpush1.bf16.msra.mxu0 0
    %361 = vmatprep.subr.bf16.mxu0 0
    %362 = vmatpush1.bf16.msra.mxu0 0
    %363 = vmatprep.subr.bf16.mxu0 0
    %364 = vmatpush1.bf16.msra.mxu0 0
    %365 = vmatprep.subr.bf16.mxu0 0
    %366 = vmatpush1.bf16.msra.mxu0 0
    %367 = vmatprep.subr.bf16.mxu0 0
    %368 = vmatpush1.bf16.msra.mxu0 0
    %369 = vmatprep.subr.bf16.mxu0 0
    %370 = vmatpush1.bf16.msra.mxu0 0
    %371 = vmatprep.subr.bf16.mxu0 0
    %372 = vmatpush1.bf16.msra.mxu0 0
    %373 = vmatprep.mubr.bf16.mxu0 0
    %374 = vmatmul.mubr.bf16.gmra.mrb[0].mxu0 %v153
    %v375 = vpop.f32.mrb[0].mxu0
    %v376 = vadd.f32 %v291, %v375
    %v377 = vpop.f32.mrb[0].mxu0
    %v378 = vpop.f32.mrb[0].mxu0
    %v379 = vadd.f32 %v291, %v378
    %v380 = vpop.f32.mrb[0].mxu0
    %381 = vdwg.mxu0
    %382 = vst [vmem:[%s5 + $0x8] sm:$0xff] %v376
    %383 = vst [vmem:[%s5 + $0x18] sm:$0xff] %v379
    // Predicated region
    $region34: #{_forward_impl.1} parent=1 // pred_check
      _
    $region35: #{_forward_impl.1} parent=1 // pred_check_branch
      %385 = sbr.rel (0) target = $region37
    $region36: #{_forward_impl.1} parent=1 // pred_region
      _
    $region37: #{_forward_impl.1} parent=1 // pred_fallthru
      _
    // Predicated region
    $region38: #{_forward_impl.1} parent=1 // pred_check
      _
    $region39: #{_forward_impl.1} parent=1 // pred_check_branch
      %387 = sbr.rel (0) target = $region41
    $region40: #{_forward_impl.1} parent=1 // pred_region
      _
    $region41: #{_forward_impl.1} parent=1 // pred_fallthru
      _
    %388 = vsyncpa [#allocation3], 1
    %389 = vsyncpa [#allocation5], 1

</llo_original>
